<compile_context>
chip_gen: v7x
topology: tpu7x:2x2x1
jax: 0.10.0
libtpu: 0.0.40
codegen_flags: <defaults>
</compile_context>

<pallas_src>
import math
import numpy as np

import jax
import jax.numpy as jnp
from jax.experimental import pallas as pl
from jax.experimental.pallas import tpu as pltpu


# ---------------------------------------------------------------------------
# Kernel 1: per-node projection score  s[n] = tanh( sum_c x[n,c] * w_hat[c] )
#           (w_hat = weight / ||weight||, pre-normalized in the wrapper)
# Output is lane-dense: each grid step writes one (1, tile_n) block.
# ---------------------------------------------------------------------------
def _score_kernel(x_ref, w_ref, s_ref):
    x = x_ref[...].astype(jnp.float32)                 # (TN, C)
    w = w_ref[...]                                     # (1,  C) f32, unit norm
    col = jnp.sum(x * w, axis=-1, keepdims=True)       # (TN, 1) one scalar per sublane
    row = jnp.transpose(col, (1, 0))                   # (1, TN) lane-dense (XLU relayout)
    s_ref[...] = jnp.tanh(row)                         # EUP on the dense layout


def topk_scores(x, w_hat, *, block_bytes=4 << 20):
    """x: (N, C), w_hat: (1, C) f32 unit-norm -> scores (N,) f32."""
    N, C = x.shape
    itemsize = jnp.dtype(x.dtype).itemsize
    # rows per tile allowed by the VMEM budget; multiple of 128 so the lane-dense
    # output block tiles cleanly when the grid has more than one step.
    cap = max(128, (block_bytes // (itemsize * C)) // 128 * 128)
    if N <= cap:
        tile_n, grid_n = N, 1          # single block: block dims == array dims
    else:
        tile_n = cap                   # multiple of 128; last block is a partial tail
        grid_n = pl.cdiv(N, tile_n)
    n_pad = grid_n * tile_n            # scores array is padded; tail sliced off below

    out = pl.pallas_call(
        _score_kernel,
        out_shape=jax.ShapeDtypeStruct((1, n_pad), jnp.float32),
        grid=(grid_n,),
        in_specs=[
            pl.BlockSpec((tile_n, C), lambda i: (i, 0)),
            pl.BlockSpec((1, C), lambda i: (0, 0)),
        ],
        out_specs=pl.BlockSpec((1, tile_n), lambda i: (0, i)),
        compiler_params=pltpu.CompilerParams(
            dimension_semantics=("parallel",)),
    )(x, w_hat)
    return out[0, :N]


# ---------------------------------------------------------------------------
# Kernel 2: batched, double-buffered DMA gather + gate.
# Each grid step gathers R rows x[perm[b*R : (b+1)*R]] from HBM into a VMEM
# slot (while the next block's rows are prefetched into the other slot) and
# writes rows * score[perm][:, None] as one (R, C) output block.
# ---------------------------------------------------------------------------
def _gather_gate_kernel(perm_ref, x_hbm, s_ref, o_ref, buf, sem):
    R = buf.shape[1]
    blk = pl.program_id(0)
    nblk = pl.num_programs(0)
    slot = blk % 2

    def issue(b, dst_slot):
        base = b * R

        @pl.loop(0, R)
        def _(r):
            pltpu.make_async_copy(
                x_hbm.at[perm_ref[base + r]],       # one (C,) row from HBM
                buf.at[dst_slot, r],                # into the gather slot
                sem.at[dst_slot]).start()

    # prologue: fetch rows for the first block
    @pl.when(blk == 0)
    def _():
        issue(0, 0)

    # prefetch the next block's rows into the other slot
    @pl.when(blk + 1 < nblk)
    def _():
        issue(blk + 1, 1 - slot)

    # wait for this block's R row copies (all signalled on sem[slot])
    @pl.loop(0, R)
    def _(r):
        pltpu.make_async_copy(x_hbm.at[0], buf.at[slot, 0], sem.at[slot]).wait()

    rows = buf[slot].astype(jnp.float32)            # (R, C)
    o_ref[...] = (rows * s_ref[...]).astype(o_ref.dtype)


def gather_gate(x, perm, score_sel, *, max_rows_per_block=512):
    """x: (N, C); perm: (K,) int32; score_sel: (K,) f32 -> x[perm] * score_sel[:, None]."""
    N, C = x.shape
    K = int(perm.shape[0])
    R = int(min(max_rows_per_block, max(8, ((K + 7) // 8) * 8)))
    nblk = (K + R - 1) // R
    Kp = nblk * R
    if Kp != K:
        perm = jnp.pad(perm, (0, Kp - K))                 # pad with row 0 (discarded)
        score_sel = jnp.pad(score_sel, (0, Kp - K))       # pad with 0.0
    perm = perm.astype(jnp.int32)
    gate = score_sel.astype(jnp.float32).reshape(Kp, 1)

    out = pl.pallas_call(
        _gather_gate_kernel,
        out_shape=jax.ShapeDtypeStruct((Kp, C), x.dtype),
        grid_spec=pltpu.PrefetchScalarGridSpec(
            num_scalar_prefetch=1,                        # perm -> SMEM
            grid=(nblk,),
            in_specs=[
                pl.BlockSpec(memory_space=pl.ANY),        # x stays in HBM; manual DMA
                pl.BlockSpec((R, 1), lambda b, perm_ref: (b, 0)),
            ],
            out_specs=pl.BlockSpec((R, C), lambda b, perm_ref: (b, 0)),
            scratch_shapes=[
                pltpu.VMEM((2, R, C), x.dtype),           # double-buffered row gather
                pltpu.SemaphoreType.DMA((2,)),            # one DMA semaphore per slot
            ],
        ),
        # grid steps form a prefetch chain (step b fetches rows for step b+1),
        # so the axis must stay sequential.
        compiler_params=pltpu.CompilerParams(
            dimension_semantics=("arbitrary",)),
    )(perm, x, gate)
    return out[:K]


# ---------------------------------------------------------------------------
# GRAPH_POOL equivalent (type='topkpool')
# ---------------------------------------------------------------------------
class GraphPool:
    def __init__(self, type, in_channels, poolratio, key):
        assert type == "topkpool", "only 'topkpool' is implemented"
        self.type = type
        self.in_channels = in_channels
        self.poolratio = poolratio
        # TopKPooling weight: shape (1, in_channels), uniform(-1/sqrt(C), 1/sqrt(C))
        bound = 1.0 / math.sqrt(in_channels)
        self.weight = jax.random.uniform(
            key, (1, in_channels), jnp.float32, -bound, bound)
        # hoisted, loop-invariant normalization (kernels never recompute ||w||)
        self.w_hat = self.weight / jnp.sqrt(jnp.sum(self.weight * self.weight))

    def __call__(self, x, edge_index, batch):
        N = x.shape[0]
        batch = jnp.asarray(batch)

        # per-graph sizes (host; needed anyway to build static output shapes)
        batch_np = np.asarray(batch)
        uniq, counts = np.unique(batch_np, return_counts=True)
        ks = [int(math.ceil(self.poolratio * int(c))) for c in counts]
        K = int(sum(ks))
        pos_list, off = [], 0
        for c, k in zip(counts, ks):
            pos_list.extend(range(off, off + k))
            off += int(c)
        pos = jnp.asarray(np.asarray(pos_list, dtype=np.int32))

        # --- hot path 1: projection score (Pallas) ---
        score = topk_scores(x, self.w_hat)                          # (N,) f32, device

        # --- per-graph top-k, on device (no score -> host sync) ---
        # sort by (batch asc, score desc, original index asc); kept positions are static
        order = jnp.lexsort((jnp.arange(N), -score, batch))
        perm = order[pos].astype(jnp.int32)                         # (K,)

        # --- hot path 2: batched DMA gather + gate (Pallas) ---
        score_sel = score[perm]                                     # (K,)
        x_out = gather_gate(x, perm, score_sel)                     # (K, C)
        batch_out = batch[perm]

        # --- filter_adj: keep edges with both endpoints retained, relabel ---
        # TODO(synk): data-dependent edge count forces a host round trip here;
        # a fully on-device variant would need static max-edge padding + masking.
        perm_np = np.asarray(perm)
        relabel = np.full((N,), -1, dtype=np.int64)
        relabel[perm_np] = np.arange(K)
        ei = np.asarray(edge_index)
        src, dst = ei[0], ei[1]
        keep = (relabel[src] >= 0) & (relabel[dst] >= 0)
        edge_index_out = jnp.asarray(
            np.stack([relabel[src[keep]], relabel[dst[keep]]]), jnp.int32)

        return x_out, edge_index_out, None, batch_out, perm, score_sel


# ---------------------------------------------------------------------------
if __name__ == "__main__":
    key = jax.random.PRNGKey(0)
    k_x, k_w = jax.random.split(key, 2)

    in_channels = 32
    poolratio = 0.5
    # two graphs: 11 nodes + 14 nodes = 25 nodes (N not a multiple of 8 or 128)
    sizes = [11, 14]
    N = sum(sizes)

    x = jax.random.normal(k_x, (N, in_channels), jnp.float32)
    batch = jnp.asarray(np.repeat(np.arange(len(sizes)), sizes), jnp.int32)

    # random intra-graph edges (20 per graph), deterministic
    rng = np.random.default_rng(0)
    edges, off = [], 0
    for s in sizes:
        src = rng.integers(0, s, size=20) + off
        dst = rng.integers(0, s, size=20) + off
        edges.append(np.stack([src, dst]))
        off += s
    edge_index = jnp.asarray(np.concatenate(edges, axis=1), jnp.int32)

    pool = GraphPool("topkpool", in_channels, poolratio, k_w)
    x_out, ei_out, _, batch_out, perm, score_sel = pool(x, edge_index, batch)
    jax.block_until_ready(x_out)
    jax.block_until_ready(score_sel)

    # --- correctness vs. references ---
    w = pool.weight
    score_ref = jnp.tanh((x * w).sum(-1) / jnp.sqrt(jnp.sum(w * w)))   # original formula
    score_dev_np = np.asarray(topk_scores(x, pool.w_hat))              # kernel scores
    np.testing.assert_allclose(score_dev_np, np.asarray(score_ref),
                               rtol=1e-5, atol=1e-5)

    # host reference per-graph top-k (stable sort on -score), built from kernel scores
    batch_np = np.asarray(batch)
    perm_chunks = []
    for g in np.unique(batch_np):
        idx = np.nonzero(batch_np == g)[0]
        k = int(math.ceil(poolratio * idx.shape[0]))
        perm_chunks.append(idx[np.argsort(-score_dev_np[idx], kind="stable")[:k]])
    perm_host = np.concatenate(perm_chunks)

    assert np.array_equal(np.asarray(perm), perm_host), "perm mismatch"
    score_ref_np = np.asarray(score_ref)
    x_ref = np.asarray(x)[perm_host] * score_ref_np[perm_host][:, None]
    np.testing.assert_allclose(np.asarray(x_out), x_ref, rtol=1e-5, atol=1e-5)
    np.testing.assert_allclose(np.asarray(score_sel), score_ref_np[perm_host],
                               rtol=1e-5, atol=1e-5)
    assert np.asarray(batch_out).tolist() == batch_np[perm_host].tolist()

    print("KERNEL_OK")
</pallas_src>

<mosaic_0001>
module attributes {stable_mosaic.version = 11 : i64} {
  func.func @_score_kernel(%arg0: i32, %arg1: memref<25x32xf32, #tpu.memory_space<vmem>>, %arg2: memref<1x32xf32, #tpu.memory_space<vmem>>, %arg3: memref<1x25xf32, #tpu.memory_space<vmem>>) attributes {dimension_semantics = [#tpu.dimension_semantics<parallel>], iteration_bounds = array<i64: 1>, scalar_prefetch = 0 : i64, scratch_operands = 0 : i64, tpu.core_type = #tpu.core_type<tc>, window_params = [{transform_indices = @transform_0, window_bounds = array<i64: 25, 32>}, {pipeline_mode = #tpu.pipeline_mode<synchronous>, transform_indices = @transform_1, window_bounds = array<i64: 1, 32>}, {transform_indices = @transform_2, window_bounds = array<i64: 1, 25>}]} {
    %c0 = arith.constant 0 : index
    %c0_0 = arith.constant 0 : index
    %0 = vector.load %arg1[%c0, %c0_0] : memref<25x32xf32, #tpu.memory_space<vmem>>, vector<25x32xf32>
    %c0_1 = arith.constant 0 : index
    %c0_2 = arith.constant 0 : index
    %1 = vector.load %arg2[%c0_1, %c0_2] : memref<1x32xf32, #tpu.memory_space<vmem>>, vector<1x32xf32>
    %2 = vector.broadcast %1 : vector<1x32xf32> to vector<25x32xf32>
    %3 = arith.mulf %0, %2 : vector<25x32xf32>
    %cst = arith.constant dense<0.000000e+00> : vector<25xf32>
    %4 = vector.multi_reduction <add>, %3, %cst [1] : vector<25x32xf32> to vector<25xf32>
    %5 = vector.shape_cast %4 : vector<25xf32> to vector<25x1xf32>
    %6 = tpu.transpose %5, [1, 0] : vector<25x1xf32> -> vector<1x25xf32>
    %7 = math.tanh %6 : vector<1x25xf32>
    %c0_3 = arith.constant 0 : index
    %c0_4 = arith.constant 0 : index
    %8 = vector.load %arg3[%c0_3, %c0_4] : memref<1x25xf32, #tpu.memory_space<vmem>>, vector<1x25xf32>
    tpu.vector_store %arg3[%c0_3, %c0_4], %7 {strides = array<i32>} : memref<1x25xf32, #tpu.memory_space<vmem>>, vector<1x25xf32>,
    return
  }
  func.func @transform_0(%arg0: i32) -> (i32, i32) {
    %c0_i32 = arith.constant 0 : i32
    %c0_i32_0 = arith.constant 0 : i32
    return %arg0, %c0_i32 : i32, i32
  }
  func.func @transform_1(%arg0: i32) -> (i32, i32) {
    %c0_i32 = arith.constant 0 : i32
    %c0_i32_0 = arith.constant 0 : i32
    %c0_i32_1 = arith.constant 0 : i32
    return %c0_i32, %c0_i32_0 : i32, i32
  }
  func.func @transform_2(%arg0: i32) -> (i32, i32) {
    %c0_i32 = arith.constant 0 : i32
    %c0_i32_0 = arith.constant 0 : i32
    return %c0_i32, %arg0 : i32, i32
  }
}

</mosaic_0001>

<llo_original>
// kernel: tpu_custom_call.1
$region0: #{tpu_custom_call.1}
  #allocation0 [shape = 'u32[]', space=smem, size = 0x4, offset = 0x4, fixed_abs, tag = 'smem constant byte address 0x4 - core index']
  #allocation1 [shape = 'u32[144,128]{1,0:T(1,128)}', space=vmem, size = 0x12000, scoped, tag = 'internal scratch']
  %s0 = inlined_call_operand.hbm [shape: f32[25,32], index: 0, kind: input, shape index: {}]
  %s1 = inlined_call_operand.vmem [shape: f32[1,32], index: 1, kind: input, shape index: {}]
  %s2 = inlined_call_operand.hbm [shape: f32[1,25], index: 2, kind: output, shape index: {}]
  %s3 = sld [smem:[#allocation0]]
  $region22: #{tpu_custom_call.1} parent=0
    _
  %s5 = ssub.s32 1, %s3
  %s6 = scalar_select 0, %s5, %s3
  $region1: #{tpu_custom_call.1} parent=0
    #allocation2 [shape = 'u8[16384]{0}', space=vmem, size = 0x4000, scoped, tag = 'input window, operand 0, single buffered']
    #allocation3 [shape = 's32[1]{0}', space=sflag, size = 0x4, scoped, tag = 'scoped memory for tpu_custom_call.1']
    #allocation4 [shape = 's32[1]{0}', space=sflag, size = 0x4, scoped, tag = 'scoped memory for tpu_custom_call.1']
    #allocation5 [shape = 'u8[512]{0}', space=vmem, size = 0x400, scoped, tag = 'output window, operand 0, single buffered']
    %7 = vsyncpa [#allocation3], 0
    %8 = vsyncpa [#allocation4], 0
    // Predicated region
    $region2: #{tpu_custom_call.1} parent=1 // pred_check
      _
    $region3: #{tpu_custom_call.1} parent=1 // pred_check_branch
      %10 = sbr.rel (0) target = $region5
    $region4: #{tpu_custom_call.1} parent=1 // pred_region
      %s12 = ssub.s32 512, 512
      %13 = vsyncadd [#allocation3], %s12
      %s14 = sshll.u32 [#allocation2], 4
      %s15 = int_to_ptr.vmem [resolvable:$true] %s14
      %20 = dma.hbm_to_vmem [thread:$0]  %s0, 512, %s15, [#allocation3], 128, 128, 8
    $region5: #{tpu_custom_call.1} parent=1 // pred_fallthru
      _
    // Predicated region
    $region6: #{tpu_custom_call.1} parent=1 // pred_check
      _
    $region7: #{tpu_custom_call.1} parent=1 // pred_check_branch
      %22 = sbr.rel (0) target = $region9
    $region8: #{tpu_custom_call.1} parent=1 // pred_region
      _
    $region9: #{tpu_custom_call.1} parent=1 // pred_fallthru
      _
    // Predicated region
    $region10: #{tpu_custom_call.1} parent=1 // pred_check
      _
    $region11: #{tpu_custom_call.1} parent=1 // pred_check_branch
      %24 = sbr.rel (0) target = $region13
    $region12: #{tpu_custom_call.1} parent=1 // pred_region
      %25 = dma.done [#allocation3], 512
    $region13: #{tpu_custom_call.1} parent=1 // pred_fallthru
      _
    %v26 = vld [vmem:[#allocation2] sm:$0xff]
    %v27 = vld [vmem:[#allocation2 + $0x8] sm:$0xff]
    %v28 = vld [vmem:[#allocation2 + $0x10] sm:$0xff]
    %v29 = vld [vmem:[#allocation2 + $0x18] sm:$0x1]
    %v30 = vld [vmem:[%s1] sm:$0x1]
    %v32 = vlaneseq
    %v33 = vshrl.u32 %v32, 7
    %v34 = vsub.s32 0, %v33
    %v35 = vrot.slane %v30, %v34
    %v37 = vmul.f32 %v26, %v35
    %v38 = vmul.f32 %v27, %v35
    %v39 = vmul.f32 %v28, %v35
    %v40 = vmul.f32 %v29, %v35
    %vm41 = vcmask 261120
    %v42 = vsel %vm41, %v37, 0.0
    %43 = vadd.xlane.f32.xlu0 %v42
    %v44 = vpop.xlane.xlu0 %43
    %v45 = vsel %vm41, %v38, 0.0
    %46 = vadd.xlane.f32.xlu0 %v45
    %v47 = vpop.xlane.xlu0 %46
    %v48 = vsel %vm41, %v39, 0.0
    %49 = vadd.xlane.f32.xlu0 %v48
    %v50 = vpop.xlane.xlu0 %49
    %vm51 = vcmask 253952
    %v52 = vsel %vm51, %v40, 0.0
    %53 = vadd.xlane.f32.xlu0 %v52
    %v54 = vpop.xlane.xlu0 %53
    %55 = vxpose.xlu0.b32.start [1/16] %v44, 128
    %56 = vxpose.xlu0.b32.cont [2/16] %v47, 128
    %57 = vxpose.xlu0.b32.cont [3/16] %v50, 128
    %58 = vxpose.xlu0.b32.cont [4/16] %v54, 128
    %59 = vxpose.xlu0.b32.cont [5/16] 0.0, 128
    %60 = vxpose.xlu0.b32.cont [6/16] 0.0, 128
    %61 = vxpose.xlu0.b32.cont [7/16] 0.0, 128
    %62 = vxpose.xlu0.b32.cont [8/16] 0.0, 128
    %63 = vxpose.xlu0.b32.cont [9/16] 0.0, 128
    %64 = vxpose.xlu0.b32.cont [10/16] 0.0, 128
    %65 = vxpose.xlu0.b32.cont [11/16] 0.0, 128
    %66 = vxpose.xlu0.b32.cont [12/16] 0.0, 128
    %67 = vxpose.xlu0.b32.cont [13/16] 0.0, 128
    %68 = vxpose.xlu0.b32.cont [14/16] 0.0, 128
    %69 = vxpose.xlu0.b32.cont [15/16] 0.0, 128
    %70 = vxpose.xlu0.b32.end [16/16] 0.0, 128
    %v71 = vpop.trf.xlu0
    %v72 = vpop.trf.xlu0
    %v73 = vpop.trf.xlu0
    %v74 = vpop.trf.xlu0
    %v75 = vpop.trf.xlu0
    %v76 = vpop.trf.xlu0
    %v77 = vpop.trf.xlu0
    %v78 = vpop.trf.xlu0
    %v79 = vpop.trf.xlu0
    %v80 = vpop.trf.xlu0
    %v81 = vpop.trf.xlu0
    %v82 = vpop.trf.xlu0
    %v83 = vpop.trf.xlu0
    %v84 = vpop.trf.xlu0
    %v85 = vpop.trf.xlu0
    %v86 = vpop.trf.xlu0
    %v87 = vtanh.pop %v71
    %vm88 = vcmask 196608
    %89 = vst.msk [vmem:[#allocation5] sm:$0x1] %vm88, %v87
    // Predicated region
    $region14: #{tpu_custom_call.1} parent=1 // pred_check
      _
    $region15: #{tpu_custom_call.1} parent=1 // pred_check_branch
      %91 = sbr.rel (0) target = $region17
    $region16: #{tpu_custom_call.1} parent=1 // pred_region
      %s93 = ssub.s32 16, 16
      %94 = vsyncadd [#allocation4], %s93
      %s96 = sshll.u32 [#allocation5], 4
      %s97 = int_to_ptr.vmem [resolvable:$true] %s96
      %99 = dma.vmem_to_hbm [thread:$0]  %s97, 16, %s2, [#allocation4]
    $region17: #{tpu_custom_call.1} parent=1 // pred_fallthru
      _
    // Predicated region
    $region18: #{tpu_custom_call.1} parent=1 // pred_check
      _
    $region19: #{tpu_custom_call.1} parent=1 // pred_check_branch
      %101 = sbr.rel (0) target = $region21
    $region20: #{tpu_custom_call.1} parent=1 // pred_region
      %102 = dma.done [#allocation4], 16
    $region21: #{tpu_custom_call.1} parent=1 // pred_fallthru
      _
    %103 = vsyncpa [#allocation3], 1
    %104 = vsyncpa [#allocation4], 1

</llo_original>
